<compile_context>
chip_gen: v7x
topology: tpu7x:2x2x1
jax: 0.10.0
libtpu: 0.0.40
codegen_flags: <defaults>
</compile_context>

<pallas_src>
import functools

import jax
import jax.numpy as jnp
from jax.experimental import pallas as pl
from jax.experimental.pallas import tpu as pltpu


def _ukd_kernel(inp_ref, tgt_ref, out_ref, *, c_in, c_tgt, alpha):
    x = inp_ref[0].astype(jnp.float32)                      # (C_in,  T)
    t = tgt_ref[0].astype(jnp.float32) * alpha              # (C_tgt, T)

    # Single exp pass over student logits (numerically stable: m is the global
    # channel max, so every exp argument is <= 0).
    m = jnp.max(x, axis=0, keepdims=True)                   # (1, T)
    e = jnp.exp(x - m)                                      # (C_in, T)
    log_se = jnp.log(jnp.sum(e, axis=0, keepdims=True))     # (1, T); den = m + log_se

    new_cl = c_in - c_tgt
    if c_in - new_cl > 1:
        no_bkg = x[1:c_in - new_cl, :] - (m + log_se)       # (C_tgt-1, T)
    else:
        no_bkg = x[1:, :] - (m + log_se)

    # logsumexp over {background, new classes} reuses e (no concat, no 2nd pass):
    #   lse_subset = m + log(e[0] + sum(e[C_tgt:]))  =>  bkg = lse_subset - den
    e_bkg = e[0:1, :] + jnp.sum(e[c_tgt:, :], axis=0, keepdims=True)   # (1, T)
    bkg = jnp.log(e_bkg) - log_se                           # (1, T)

    # Teacher softmax over channels (reciprocal-multiply instead of divide).
    tm = jnp.max(t, axis=0, keepdims=True)
    et = jnp.exp(t - tm)
    inv_st = pl.reciprocal(jnp.sum(et, axis=0, keepdims=True), approx=False)
    labels = et * inv_st                                    # (C_tgt, T)

    # Per-pixel partial loss; the /C_tgt, negate and mean happen host-side.
    loss = (labels[0:1, :] * bkg
            + jnp.sum(labels[1:, :] * no_bkg, axis=0, keepdims=True))   # (1, T)

    out_ref[0] = loss                                       # out block is (1, 1, T)


def _pick_tile_hw(hw, cap=4096):
    """Largest multiple of 128 that divides hw and is <= cap; else full hw."""
    if hw % 128 != 0:
        return hw  # full-extent block (always legal)
    t = min(hw, max(128, (cap // 128) * 128))
    while hw % t:
        t -= 128
    return t


def unbiased_kd_loss(inputs, targets, *, alpha=1.0, reduction="mean",
                     tile_hw_cap=4096):
    """inputs: (B, C_in, H, W) logits; targets: (B, C_tgt, H, W) logits."""
    assert reduction == "mean"  # TODO(synk): 'sum' / 'none' reductions and optional mask not wired up.
    B, c_in, H, W = inputs.shape
    _, c_tgt, _, _ = targets.shape
    hw = H * W

    tile = _pick_tile_hw(hw, tile_hw_cap)
    num_tiles = hw // tile

    x = inputs.reshape(B, c_in, hw)     # channels on sublanes, pixels on lanes
    t = targets.reshape(B, c_tgt, hw)

    kernel = functools.partial(_ukd_kernel, c_in=c_in, c_tgt=c_tgt,
                               alpha=float(alpha))

    partial = pl.pallas_call(
        kernel,
        out_shape=jax.ShapeDtypeStruct((B, 1, hw), jnp.float32),
        grid_spec=pltpu.PrefetchScalarGridSpec(
            num_scalar_prefetch=0,
            grid=(B, num_tiles),
            in_specs=[
                pl.BlockSpec((1, c_in, tile), lambda b, ti: (b, 0, ti)),
                pl.BlockSpec((1, c_tgt, tile), lambda b, ti: (b, 0, ti)),
            ],
            out_specs=pl.BlockSpec((1, 1, tile), lambda b, ti: (b, 0, ti)),
        ),
        compiler_params=pltpu.CompilerParams(
            dimension_semantics=("parallel", "parallel")),
    )(x, t)

    # reduction == 'mean':  -sum(loss_pix) / (B*H*W),  with /C_tgt folded in.
    inv_count = 1.0 / float(B * hw * c_tgt)
    return -jnp.sum(partial) * inv_count


def _reference(inputs, targets, alpha=1.0):
    """Pure-JAX transcription of the PyTorch forward (mask=None, 'mean')."""
    targets = targets * alpha
    c_in = inputs.shape[1]
    c_tgt = targets.shape[1]
    new_cl = c_in - c_tgt
    idx = jnp.array([0] + list(range(c_tgt, c_in)))
    den = jax.scipy.special.logsumexp(inputs, axis=1)
    if c_in - new_cl > 1:
        no_bkg = inputs[:, 1:-new_cl] - den[:, None]
    else:
        no_bkg = inputs[:, 1:] - den[:, None]
    bkg = jax.scipy.special.logsumexp(inputs[:, idx, :, :], axis=1) - den
    labels = jax.nn.softmax(targets, axis=1)
    loss = (labels[:, 0] * bkg + (labels[:, 1:] * no_bkg).sum(axis=1)) / c_tgt
    return -jnp.mean(loss)


if __name__ == "__main__":
    key = jax.random.PRNGKey(0)
    k1, k2 = jax.random.split(key)

    B, C_tgt, H, W = 2, 4, 16, 16
    C_in = C_tgt + 1  # new_cl = 1

    inputs = jax.random.normal(k1, (B, C_in, H, W), dtype=jnp.float32) * 2.0
    targets = jax.random.normal(k2, (B, C_tgt, H, W), dtype=jnp.float32) * 2.0

    out = unbiased_kd_loss(inputs, targets, alpha=1.0, reduction="mean")
    out = jax.block_until_ready(out)

    ref = _reference(inputs, targets, alpha=1.0)
    assert jnp.allclose(out, ref, rtol=1e-5, atol=1e-5), (out, ref)

    print("KERNEL_OK")
</pallas_src>

<mosaic_0001>
module attributes {stable_mosaic.version = 11 : i64} {
  func.func @_ukd_kernel(%arg0: i32, %arg1: i32, %arg2: memref<1x5x256xf32, #tpu.memory_space<vmem>>, %arg3: memref<1x4x256xf32, #tpu.memory_space<vmem>>, %arg4: memref<1x1x256xf32, #tpu.memory_space<vmem>>) attributes {dimension_semantics = [#tpu.dimension_semantics<parallel>, #tpu.dimension_semantics<parallel>], iteration_bounds = array<i64: 2, 1>, scalar_prefetch = 0 : i64, scratch_operands = 0 : i64, tpu.core_type = #tpu.core_type<tc>, window_params = [{transform_indices = @transform_0, window_bounds = array<i64: 1, 5, 256>}, {transform_indices = @transform_1, window_bounds = array<i64: 1, 4, 256>}, {transform_indices = @transform_2, window_bounds = array<i64: 1, 1, 256>}]} {
    %c0 = arith.constant 0 : index
    %c0_0 = arith.constant 0 : index
    %c0_1 = arith.constant 0 : index
    %0 = vector.load %arg2[%c0, %c0_0, %c0_1] : memref<1x5x256xf32, #tpu.memory_space<vmem>>, vector<1x5x256xf32>
    %1 = vector.shape_cast %0 : vector<1x5x256xf32> to vector<5x256xf32>
    %c0_2 = arith.constant 0 : index
    %c0_3 = arith.constant 0 : index
    %c0_4 = arith.constant 0 : index
    %2 = vector.load %arg3[%c0_2, %c0_3, %c0_4] : memref<1x4x256xf32, #tpu.memory_space<vmem>>, vector<1x4x256xf32>
    %3 = vector.shape_cast %2 : vector<1x4x256xf32> to vector<4x256xf32>
    %cst = arith.constant 1.000000e+00 : f32
    %4 = vector.broadcast %cst : f32 to vector<4x256xf32>
    %5 = arith.mulf %3, %4 : vector<4x256xf32>
    %cst_5 = arith.constant dense<0xFF800000> : vector<256xf32>
    %6 = vector.multi_reduction <maximumf>, %1, %cst_5 [0] : vector<5x256xf32> to vector<256xf32>
    %7 = vector.shape_cast %6 : vector<256xf32> to vector<1x256xf32>
    %8 = vector.broadcast %7 : vector<1x256xf32> to vector<5x256xf32>
    %9 = arith.subf %1, %8 : vector<5x256xf32>
    %10 = math.exp %9 : vector<5x256xf32>
    %cst_6 = arith.constant dense<0.000000e+00> : vector<256xf32>
    %11 = vector.multi_reduction <add>, %10, %cst_6 [0] : vector<5x256xf32> to vector<256xf32>
    %12 = vector.shape_cast %11 : vector<256xf32> to vector<1x256xf32>
    %13 = math.log %12 : vector<1x256xf32>
    %14 = vector.extract_strided_slice %1 {offsets = [1, 0], sizes = [3, 256], strides = [1, 1]} : vector<5x256xf32> to vector<3x256xf32>
    %15 = arith.addf %7, %13 : vector<1x256xf32>
    %16 = vector.broadcast %15 : vector<1x256xf32> to vector<3x256xf32>
    %17 = arith.subf %14, %16 : vector<3x256xf32>
    %18 = vector.extract_strided_slice %10 {offsets = [0, 0], sizes = [1, 256], strides = [1, 1]} : vector<5x256xf32> to vector<1x256xf32>
    %19 = vector.extract_strided_slice %10 {offsets = [4, 0], sizes = [1, 256], strides = [1, 1]} : vector<5x256xf32> to vector<1x256xf32>
    %cst_7 = arith.constant dense<0.000000e+00> : vector<256xf32>
    %20 = vector.multi_reduction <add>, %19, %cst_7 [0] : vector<1x256xf32> to vector<256xf32>
    %21 = vector.shape_cast %20 : vector<256xf32> to vector<1x256xf32>
    %22 = arith.addf %18, %21 : vector<1x256xf32>
    %23 = math.log %22 : vector<1x256xf32>
    %24 = arith.subf %23, %13 : vector<1x256xf32>
    %cst_8 = arith.constant dense<0xFF800000> : vector<256xf32>
    %25 = vector.multi_reduction <maximumf>, %5, %cst_8 [0] : vector<4x256xf32> to vector<256xf32>
    %26 = vector.shape_cast %25 : vector<256xf32> to vector<1x256xf32>
    %27 = vector.broadcast %26 : vector<1x256xf32> to vector<4x256xf32>
    %28 = arith.subf %5, %27 : vector<4x256xf32>
    %29 = math.exp %28 : vector<4x256xf32>
    %cst_9 = arith.constant dense<0.000000e+00> : vector<256xf32>
    %30 = vector.multi_reduction <add>, %29, %cst_9 [0] : vector<4x256xf32> to vector<256xf32>
    %31 = vector.shape_cast %30 : vector<256xf32> to vector<1x256xf32>
    %32 = tpu.reciprocal %31 : vector<1x256xf32> -> vector<1x256xf32>
    %33 = vector.broadcast %32 : vector<1x256xf32> to vector<4x256xf32>
    %34 = arith.mulf %29, %33 : vector<4x256xf32>
    %35 = vector.extract_strided_slice %34 {offsets = [0, 0], sizes = [1, 256], strides = [1, 1]} : vector<4x256xf32> to vector<1x256xf32>
    %36 = arith.mulf %35, %24 : vector<1x256xf32>
    %37 = vector.extract_strided_slice %34 {offsets = [1, 0], sizes = [3, 256], strides = [1, 1]} : vector<4x256xf32> to vector<3x256xf32>
    %38 = arith.mulf %37, %17 : vector<3x256xf32>
    %cst_10 = arith.constant dense<0.000000e+00> : vector<256xf32>
    %39 = vector.multi_reduction <add>, %38, %cst_10 [0] : vector<3x256xf32> to vector<256xf32>
    %40 = vector.shape_cast %39 : vector<256xf32> to vector<1x256xf32>
    %41 = arith.addf %36, %40 : vector<1x256xf32>
    %c0_11 = arith.constant 0 : index
    %c0_12 = arith.constant 0 : index
    %c0_13 = arith.constant 0 : index
    %42 = vector.load %arg4[%c0_11, %c0_12, %c0_13] : memref<1x1x256xf32, #tpu.memory_space<vmem>>, vector<1x1x256xf32>
    %43 = vector.shape_cast %42 : vector<1x1x256xf32> to vector<1x256xf32>
    %44 = vector.shape_cast %41 : vector<1x256xf32> to vector<1x1x256xf32>
    tpu.vector_store %arg4[%c0_11, %c0_12, %c0_13], %44 {strides = array<i32>} : memref<1x1x256xf32, #tpu.memory_space<vmem>>, vector<1x1x256xf32>,
    return
  }
  func.func @transform_0(%arg0: i32, %arg1: i32) -> (i32, i32, i32) {
    %c0_i32 = arith.constant 0 : i32
    %c0_i32_0 = arith.constant 0 : i32
    return %arg0, %c0_i32, %arg1 : i32, i32, i32
  }
  func.func @transform_1(%arg0: i32, %arg1: i32) -> (i32, i32, i32) {
    %c0_i32 = arith.constant 0 : i32
    %c0_i32_0 = arith.constant 0 : i32
    return %arg0, %c0_i32, %arg1 : i32, i32, i32
  }
  func.func @transform_2(%arg0: i32, %arg1: i32) -> (i32, i32, i32) {
    %c0_i32 = arith.constant 0 : i32
    %c0_i32_0 = arith.constant 0 : i32
    return %arg0, %c0_i32, %arg1 : i32, i32, i32
  }
}

</mosaic_0001>

<llo_original>
// kernel: tpu_custom_call.1
$region0: #{tpu_custom_call.1}
  #allocation0 [shape = 'u32[]', space=smem, size = 0x4, offset = 0x4, fixed_abs, tag = 'smem constant byte address 0x4 - core index']
  #allocation1 [shape = 'u32[144,128]{1,0:T(1,128)}', space=vmem, size = 0x12000, scoped, tag = 'internal scratch']
  %s0 = inlined_call_operand.vmem [shape: f32[2,5,256], index: 0, kind: input, shape index: {}]
  %s1 = inlined_call_operand.vmem [shape: f32[2,4,256], index: 1, kind: input, shape index: {}]
  %s2 = inlined_call_operand.hbm [shape: f32[2,1,256], index: 2, kind: output, shape index: {}]
  %s3 = sld [smem:[#allocation0]]
  $region41: #{tpu_custom_call.1} parent=0
    _
  %s5 = ssub.s32 1, %s3
  %s6 = scalar_select 0, %s5, %s3
  $region1: #{tpu_custom_call.1} parent=0
    #allocation2 [shape = 'u8[2048]{0}', space=vmem, size = 0x800, scoped, tag = 'output window, operand 0']
    #allocation3 [shape = 's32[2]{0}', space=sflag, size = 0x8, scoped, tag = 'scoped memory for tpu_custom_call.1']
    %7 = vsyncpa [#allocation3], 0
    %s8 = scalar_lea.sflag [#allocation3], 1
    %9 = vsyncpa %s8, 0
    loop: start=0, step=1, limit=4
    $region2: #{tpu_custom_call.1} parent=1 // loop_pre_header
      _
    $region3: #{tpu_custom_call.1} parent=1 // loop_header
      %s11 = sphi 0, %s15
      %p12 = scmp.ge.s32.totalorder %s11, 4
      %s18 = sphi 0, %s30
      %s19 = sphi 0, %s26
      %s20 = sphi 0, %s18
      %s21 = sphi 0, %s19
      %s22 = sphi 0, %s20
      %s23 = sphi 0, %s21
      %s35 = sphi 0, %s37
      %s38 = sphi 0, %s35
      %s39 = sphi 0, %s38
      %s55 = sphi 0, %s39
      %s63 = sphi 0, %s65
      %s66 = sphi 0, %s63
      %s67 = sphi 0, %s66
      %s83 = sphi 0, %s67
      %s91 = sphi 0, %s93
      %s94 = sphi 0, %s91
      %s95 = sphi 0, %s94
      %s111 = sphi 0, %s95
    $region4: #{tpu_custom_call.1} parent=1 // loop_header_branch
      %14 = sbr.rel (%p12) target = $region8
    $region5: #{tpu_custom_call.1} parent=1 // loop_body
      %s16 = ssub.s32 %s11, 1
      %s17 = ssub.s32 %s11, 2
      %s24 = sadd.s32 1, %s19
      %p25 = scmp.ge.s32.totalorder %s24, 1
      %s26 = scalar_select %p25, 0, %s24
      %s27 = sadd.s32 1, %s18
      %s28 = scalar_select %p25, %s27, %s18
      %p29 = scmp.ge.s32.totalorder %s28, 2
      %s30 = scalar_select %p29, 0, %s28
      %s31 = ssub.s32 %s18, %s30
      %s32 = ssub.s32 %s19, %s26
      %s33 = sor.u32 %s31, %s32
      %p34 = scmp.eq.s32.totalorder %s33, 0
      %s36 = sadd.s32 %s35, 1
      %s37 = scalar_select %p34, %s35, %s36
      %p40 = pneg %p34
      %p41 = scmp.eq.s32.totalorder %s11, 1
      %p42 = por %p40, %p41
      %p43 = scmp.ne.s32.totalorder %s35, %s38
      %p44 = scmp.eq.s32.totalorder %s11, 0
      %p45 = por %p43, %p44
      %p46 = scmp.ne.s32.totalorder %s35, %s38
      %p47 = scmp.eq.s32.totalorder %s16, 1
      %p48 = por %p46, %p47
      %p49 = scmp.ne.s32.totalorder %s38, %s39
      %p50 = scmp.eq.s32.totalorder %s16, 0
      %p51 = por %p49, %p50
      %p52 = scmp.ne.s32.totalorder %s38, %s39
      %p53 = scmp.eq.s32.totalorder %s17, 1
      %p54 = por %p52, %p53
      %p56 = scmp.ne.s32.totalorder %s39, %s55
      %p57 = scmp.eq.s32.totalorder %s17, 0
      %p58 = por %p56, %p57
      %s59 = ssub.s32 %s18, %s30
      %s60 = ssub.s32 %s19, %s26
      %s61 = sor.u32 %s59, %s60
      %p62 = scmp.eq.s32.totalorder %s61, 0
      %s64 = sadd.s32 %s63, 1
      %s65 = scalar_select %p62, %s63, %s64
      %p68 = pneg %p62
      %p69 = scmp.eq.s32.totalorder %s11, 1
      %p70 = por %p68, %p69
      %p71 = scmp.ne.s32.totalorder %s63, %s66
      %p72 = scmp.eq.s32.totalorder %s11, 0
      %p73 = por %p71, %p72
      %p74 = scmp.ne.s32.totalorder %s63, %s66
      %p75 = scmp.eq.s32.totalorder %s16, 1
      %p76 = por %p74, %p75
      %p77 = scmp.ne.s32.totalorder %s66, %s67
      %p78 = scmp.eq.s32.totalorder %s16, 0
      %p79 = por %p77, %p78
      %p80 = scmp.ne.s32.totalorder %s66, %s67
      %p81 = scmp.eq.s32.totalorder %s17, 1
      %p82 = por %p80, %p81
      %p84 = scmp.ne.s32.totalorder %s67, %s83
      %p85 = scmp.eq.s32.totalorder %s17, 0
      %p86 = por %p84, %p85
      %s87 = ssub.s32 %s18, %s30
      %s88 = ssub.s32 %s19, %s26
      %s89 = sor.u32 %s87, %s88
      %p90 = scmp.eq.s32.totalorder %s89, 0
      %s92 = sadd.s32 %s91, 1
      %s93 = scalar_select %p90, %s91, %s92
      %p96 = pneg %p90
      %p97 = scmp.eq.s32.totalorder %s11, 1
      %p98 = por %p96, %p97
      %p99 = scmp.ne.s32.totalorder %s91, %s94
      %p100 = scmp.eq.s32.totalorder %s11, 0
      %p101 = por %p99, %p100
      %p102 = scmp.ne.s32.totalorder %s91, %s94
      %p103 = scmp.eq.s32.totalorder %s16, 1
      %p104 = por %p102, %p103
      %p105 = scmp.ne.s32.totalorder %s94, %s95
      %p106 = scmp.eq.s32.totalorder %s16, 0
      %p107 = por %p105, %p106
      %p108 = scmp.ne.s32.totalorder %s94, %s95
      %p109 = scmp.eq.s32.totalorder %s17, 1
      %p110 = por %p108, %p109
      %p112 = scmp.ne.s32.totalorder %s95, %s111
      %p113 = scmp.eq.s32.totalorder %s17, 0
      %p114 = por %p112, %p113
      %p115 = scmp.le.s32.totalorder 1, %s11
      %p116 = scmp.lt.s32.totalorder %s11, 3
      %p117 = pnand %p115, %p116
      %p118 = pneg %p117
      // Predicated region
      $region9: #{tpu_custom_call.1} parent=5 // pred_check
        _
      $region10: #{tpu_custom_call.1} parent=5 // pred_check_branch
        %120 = sbr.rel (%p117) target = $region12
      $region11: #{tpu_custom_call.1} parent=5 // pred_region
        %s121 = ssub.s32 %s11, 1
      $region12: #{tpu_custom_call.1} parent=5 // pred_fallthru
        _
      %p122 = scmp.lt.s32.totalorder %s11, 2
      // Predicated region
      $region13: #{tpu_custom_call.1} parent=5 // pred_check
        %p123 = pneg %p122
      $region14: #{tpu_custom_call.1} parent=5 // pred_check_branch
        %125 = sbr.rel (%p123) target = $region16
      $region15: #{tpu_custom_call.1} parent=5 // pred_region
        // Predicated region
        $region17: #{tpu_custom_call.1} parent=15 // pred_check
          %p126 = pneg %p45
        $region18: #{tpu_custom_call.1} parent=15 // pred_check_branch
          %128 = sbr.rel (%p126) target = $region20
        $region19: #{tpu_custom_call.1} parent=15 // pred_region
          %s129 = smul.u32 2, %s19
          %p130 = scmp.lt.s32.totalorder %s18, 1
          %s131 = scalar_select %p130, %s18, 1
          %p132 = scmp.lt.s32.totalorder %s129, 1
          %s133 = scalar_select %p132, %s129, 1
          %s134 = smul.addr %s131, 2
          %s135 = sadd.s32 %s133, %s134
          %s136 = smul.addr %s135, 8
          %s137 = scalar_lea.vmem %s0, %s136
          %s138 = smul.u32 2, %s19
        $region20: #{tpu_custom_call.1} parent=15 // pred_fallthru
          _
        // Predicated region
        $region21: #{tpu_custom_call.1} parent=15 // pred_check
          %p139 = pneg %p73
        $region22: #{tpu_custom_call.1} parent=15 // pred_check_branch
          %141 = sbr.rel (%p139) target = $region24
        $region23: #{tpu_custom_call.1} parent=15 // pred_region
          %s142 = smul.u32 2, %s19
          %p143 = scmp.lt.s32.totalorder %s18, 1
          %s144 = scalar_select %p143, %s18, 1
          %p145 = scmp.lt.s32.totalorder %s142, 1
          %s146 = scalar_select %p145, %s142, 1
          %s147 = smul.addr %s144, 2
          %s148 = sadd.s32 %s146, %s147
          %s149 = smul.addr %s148, 4
          %s150 = scalar_lea.vmem %s1, %s149
          %s151 = smul.u32 2, %s19
        $region24: #{tpu_custom_call.1} parent=15 // pred_fallthru
          _
      $region16: #{tpu_custom_call.1} parent=5 // pred_fallthru
        _
      %p152 = scmp.le.s32.totalorder 1, %s11
      %p153 = scmp.lt.s32.totalorder %s11, 3
      %p154 = pnand %p152, %p153
      %p155 = pneg %p154
      // Predicated region
      $region25: #{tpu_custom_call.1} parent=5 // pred_check
        _
      $region26: #{tpu_custom_call.1} parent=5 // pred_check_branch
        %157 = sbr.rel (%p154) target = $region28
      $region27: #{tpu_custom_call.1} parent=5 // pred_region
        %s158 = ssub.s32 %s11, 1
        %s159 = smul.u32 2, %s21
        %p160 = scmp.lt.s32.totalorder %s20, 1
        %s161 = scalar_select %p160, %s20, 1
        %p162 = scmp.lt.s32.totalorder %s159, 1
        %s163 = scalar_select %p162, %s159, 1
        %s164 = smul.addr %s161, 2
        %s165 = sadd.s32 %s163, %s164
        %s166 = smul.addr %s165, 8
        %s167 = scalar_lea.vmem %s0, %s166
        %p168 = pneg %p51
        %p169 = pneg %p48
        %s170 = smul.u32 2, %s21
        %p171 = scmp.lt.s32.totalorder %s20, 1
        %s172 = scalar_select %p171, %s20, 1
        %p173 = scmp.lt.s32.totalorder %s170, 1
        %s174 = scalar_select %p173, %s170, 1
        %s175 = smul.addr %s172, 2
        %s176 = sadd.s32 %s174, %s175
        %s177 = smul.addr %s176, 4
        %s178 = scalar_lea.vmem %s1, %s177
        %p179 = pneg %p79
        %p180 = pneg %p76
        %p181 = pneg %p107
        %p182 = pneg %p104
        %s183 = sand.u32 %s94, 1
        %s184 = scalar_lea.sflag [#allocation3], %s183
        %s185 = sand.u32 %s94, 1
        %s186 = smul.addr %s185, 2
        %s187 = scalar_lea.vmem [#allocation2], %s186
        %s188 = smul.u32 2, %s21
        %p189 = scmp.lt.s32.totalorder %s20, 1
        %s190 = scalar_select %p189, %s20, 1
        %p191 = scmp.lt.s32.totalorder %s188, 1
        %s192 = scalar_select %p191, %s188, 1
        %s193 = smul.addr %s190, 2
        %s194 = sadd.s32 %s192, %s193
        %s195 = smul.addr %s194, 8
        %s196 = scalar_lea.vmem %s0, %s195
        %s197 = smul.u32 2, %s21
        %s198 = smul.u32 2, %s21
        %p199 = scmp.lt.s32.totalorder %s20, 1
        %s200 = scalar_select %p199, %s20, 1
        %p201 = scmp.lt.s32.totalorder %s198, 1
        %s202 = scalar_select %p201, %s198, 1
        %s203 = smul.addr %s200, 2
        %s204 = sadd.s32 %s202, %s203
        %s205 = smul.addr %s204, 4
        %s206 = scalar_lea.vmem %s1, %s205
        %s207 = smul.u32 2, %s21
        %s208 = smul.u32 2, %s21
        %v209 = vld [vmem:[%s196] sm:$0x1f]
        %v210 = vld [vmem:[%s196 + $0x8] sm:$0x1f]
        %v211 = vld [vmem:[%s206] sm:$0xff]
        %vm212 = vcmask 1044480
        %v213 = vsel %vm212, %v209, -inf
        %v214 = vrot.slane %v213, 4
        %v215 = vmax.f32 %v213, %v214
        %v216 = vrot.slane %v215, 2
        %v217 = vmax.f32 %v215, %v216
        %v218 = vrot.slane %v217, 1
        %v219 = vmax.f32 %v217, %v218
        %v220 = vsel %vm212, %v210, -inf
        %v221 = vrot.slane %v220, 4
        %v222 = vmax.f32 %v220, %v221
        %v223 = vrot.slane %v222, 2
        %v224 = vmax.f32 %v222, %v223
        %v225 = vrot.slane %v224, 1
        %v226 = vmax.f32 %v224, %v225
        %v227 = vsub.f32 %v209, %v219
        %v228 = vsub.f32 %v210, %v226
        %v229 = vmul.f32 %v227, 1.442695
        %v230 = vpow.pop %v229
        %v231 = vmul.f32 %v228, 1.442695
        %v232 = vpow.pop %v231
        %v233 = vsel %vm212, %v230, 0.0
        %v234 = vrot.slane %v233, 4
        %v235 = vadd.f32 %v233, %v234
        %v236 = vrot.slane %v235, 2
        %v237 = vadd.f32 %v235, %v236
        %v238 = vrot.slane %v237, 1
        %v239 = vadd.f32 %v237, %v238
        %v240 = vsel %vm212, %v232, 0.0
        %v241 = vrot.slane %v240, 4
        %v242 = vadd.f32 %v240, %v241
        %v243 = vrot.slane %v242, 2
        %v244 = vadd.f32 %v242, %v243
        %v245 = vrot.slane %v244, 1
        %v246 = vadd.f32 %v244, %v245
        %v247 = vlog2.pop %v239
        %v248 = vmul.f32 %v247, 0.6931472
        %v249 = vlog2.pop %v246
        %v250 = vmul.f32 %v249, 0.6931472
        %v251 = vadd.f32 %v219, %v248
        %v252 = vadd.f32 %v226, %v250
        %v253 = vsub.f32 %v209, %v251
        %v254 = vsub.f32 %v210, %v252
        %v255 = vadd.f32 %v230, 0.0
        %v256 = vadd.f32 %v232, 0.0
        %v259 = vrot.slane %v255, 4
        %v260 = vrot.slane %v256, 4
        %v263 = vadd.f32 %v230, %v259
        %v264 = vadd.f32 %v232, %v260
        %v265 = vlog2.pop %v263
        %v266 = vmul.f32 %v265, 0.6931472
        %v267 = vlog2.pop %v264
        %v268 = vmul.f32 %v267, 0.6931472
        %v269 = vsub.f32 %v266, %v248
        %v270 = vsub.f32 %v268, %v250
        %v272 = vcombine.high %v211, %v211
        %vm274 = vcmask 1043456
        %v275 = vsel %vm274, %v211, -inf
        %v276 = vrot.slane %v275, 4
        %v277 = vmax.f32 %v275, %v276
        %v278 = vrot.slane %v277, 2
        %v279 = vmax.f32 %v277, %v278
        %v280 = vrot.slane %v279, 1
        %v281 = vmax.f32 %v279, %v280
        %v282 = vsel %vm274, %v272, -inf
        %v283 = vrot.slane %v282, 4
        %v284 = vmax.f32 %v282, %v283
        %v285 = vrot.slane %v284, 2
        %v286 = vmax.f32 %v284, %v285
        %v287 = vrot.slane %v286, 1
        %v288 = vmax.f32 %v286, %v287
        %v291 = vcombine.low %v281, %v288
        %v293 = vsub.f32 %v211, %v291
        %v294 = vmul.f32 %v293, 1.442695
        %v295 = vpow.pop %v294
        %v297 = vcombine.high %v295, %v295
        %v299 = vsel %vm274, %v295, 0.0
        %v300 = vrot.slane %v299, 4
        %v301 = vadd.f32 %v299, %v300
        %v302 = vrot.slane %v301, 2
        %v303 = vadd.f32 %v301, %v302
        %v304 = vrot.slane %v303, 1
        %v305 = vadd.f32 %v303, %v304
        %v306 = vsel %vm274, %v297, 0.0
        %v307 = vrot.slane %v306, 4
        %v308 = vadd.f32 %v306, %v307
        %v309 = vrot.slane %v308, 2
        %v310 = vadd.f32 %v308, %v309
        %v311 = vrot.slane %v310, 1
        %v312 = vadd.f32 %v310, %v311
        %v313 = vrcp.pop %v305
        %v314 = vrcp.pop %v312
        %v317 = vcombine.low %v313, %v314
        %v319 = vmul.f32 %v295, %v317
        %v322 = vcombine.low %v269, %v270
        %v324 = vmul.f32 %v319, %v322
        %v327 = vcombine.low %v253, %v254
        %v329 = vmul.f32 %v319, %v327
        %v331 = vcombine.high %v329, %v329
        %v332 = vrot.slane %v329, 1
        %v333 = vrot.slane %v331, 1
        %vm336 = vcmask 1042432
        %v337 = vsel %vm336, %v332, 0.0
        %v338 = vrot.slane %v337, 4
        %v339 = vadd.f32 %v337, %v338
        %v340 = vrot.slane %v339, 2
        %v341 = vadd.f32 %v339, %v340
        %v342 = vrot.slane %v341, 1
        %v343 = vadd.f32 %v341, %v342
        %v344 = vsel %vm336, %v333, 0.0
        %v345 = vrot.slane %v344, 4
        %v346 = vadd.f32 %v344, %v345
        %v347 = vrot.slane %v346, 2
        %v348 = vadd.f32 %v346, %v347
        %v349 = vrot.slane %v348, 1
        %v350 = vadd.f32 %v348, %v349
        %v353 = vcombine.low %v343, %v350
        %v355 = vadd.f32 %v324, %v353
        %v358 = vunpack.c.l.s4 1966171168
        %v359 = vunpack.c.0.s8 %v358
        %v360 = vlaneseq
        %v361 = vshrl.u32 %v360, 7
        %v362 = vsub.s32 %v359, %v361
        %v363 = vrot.slane %v355, %v362
        %v365 = vunpack.c.l.s4 1966171168
        %v366 = vunpack.c.0.s8 %v365
        %v367 = vlaneseq
        %v368 = vshrl.u32 %v367, 7
        %v369 = vsub.s32 %v366, %v368
        %v370 = vrot.slane %v363, %v369
        %v372 = vlaneseq
        %vm373 = vcmp.ge.s32.totalorder %v372, 0
        %vm374 = vcmp.lt.s32.totalorder %v372, 256
        %vm375 = vmand %vm373, %vm374
        %376 = vst.msk [vmem:[%s187] sm:$0x3] %vm375, %v370
        %s377 = sand.u32 %s94, 1
        %s378 = scalar_lea.sflag [#allocation3], %s377
        %s379 = sand.u32 %s94, 1
        %s380 = smul.addr %s379, 2
        %s381 = scalar_lea.vmem [#allocation2], %s380
        // Predicated region
        $region29: #{tpu_custom_call.1} parent=27 // pred_check
          %p382 = pneg %p104
        $region30: #{tpu_custom_call.1} parent=27 // pred_check_branch
          %384 = sbr.rel (%p382) target = $region32
        $region31: #{tpu_custom_call.1} parent=27 // pred_region
          %s385 = smul.u32 2, %s21
          %s387 = ssub.s32 32, 32
          %388 = vsyncadd %s378, %s387
          %s389 = smul.addr %s20, 2
          %s390 = sadd.s32 %s385, %s389
          %s391 = smul.addr %s390, 16
          %s392 = scalar_lea.hbm %s2, %s391
          %s394 = sshll.u32 %s381, 4
          %s395 = int_to_ptr.vmem [resolvable:$true] %s394
          %397 = dma.vmem_to_hbm [thread:$0]  %s395, 32, %s392, %s378
        $region32: #{tpu_custom_call.1} parent=27 // pred_fallthru
          _
      $region28: #{tpu_custom_call.1} parent=5 // pred_fallthru
        _
      %p398 = scmp.le.s32.totalorder 2, %s11
      // Predicated region
      $region33: #{tpu_custom_call.1} parent=5 // pred_check
        %p399 = pneg %p398
      $region34: #{tpu_custom_call.1} parent=5 // pred_check_branch
        %401 = sbr.rel (%p399) target = $region36
      $region35: #{tpu_custom_call.1} parent=5 // pred_region
        %s402 = ssub.s32 %s11, 2
        // Predicated region
        $region37: #{tpu_custom_call.1} parent=35 // pred_check
          %p403 = pneg %p110
        $region38: #{tpu_custom_call.1} parent=35 // pred_check_branch
          %405 = sbr.rel (%p403) target = $region40
        $region39: #{tpu_custom_call.1} parent=35 // pred_region
          %s406 = sand.u32 %s95, 1
          %s407 = scalar_lea.sflag [#allocation3], %s406
          %s408 = sand.u32 %s95, 1
          %s409 = smul.addr %s408, 2
          %s410 = scalar_lea.vmem [#allocation2], %s409
          %411 = dma.done %s407, 32
        $region40: #{tpu_custom_call.1} parent=35 // pred_fallthru
          _
      $region36: #{tpu_custom_call.1} parent=5 // pred_fallthru
        _
    $region6: #{tpu_custom_call.1} parent=1 // loop_footer
      %s15 = sadd.s32 1, %s11
    $region7: #{tpu_custom_call.1} parent=1 // loop_footer_branch
      %10 = sbr.rel target = $region3
    $region8: #{tpu_custom_call.1} parent=1 // loop_exit
      _
    %412 = vsyncpa [#allocation3], 1
    %s413 = scalar_lea.sflag [#allocation3], 1
    %414 = vsyncpa %s413, 1

</llo_original>
